<compile_context>
chip_gen: v7x
topology: tpu7x:2x2x1
jax: 0.10.0
libtpu: 0.0.40
codegen_flags: <defaults>
</compile_context>

<pallas_src>
import math

import jax
import jax.numpy as jnp
from jax.experimental import pallas as pl
from jax.experimental.pallas import tpu as pltpu


# ----------------------------------------------------------------------------
# Pallas kernel: ElementWiseLayer  out = x * W + B
# ----------------------------------------------------------------------------

def _round_up(v, m):
    return ((v + m - 1) // m) * m


def _ew_kernel(x_ref, w_ref, b_ref, o_ref):
    # x_ref / o_ref : (1, Rt, 128)   w_ref / b_ref : (Rt, 128)
    o_ref[0] = (x_ref[0] * w_ref[...] + b_ref[...]).astype(o_ref.dtype)


def element_wise_layer(x, W, B, *, rt_target=2048):
    """x: (batch, c, n, n, n//2+1); W, B: (1, c, n, n, n//2+1). Returns x*W+B."""
    batch = x.shape[0]
    feat_shape = x.shape[1:]
    F = math.prod(feat_shape)
    assert W.shape == (1,) + feat_shape and B.shape == (1,) + feat_shape

    lanes, sub = 128, 8
    assert rt_target % sub == 0

    # Pad the flattened feature axis so it maps to a (R, 128) view with R a
    # multiple of 8 (sublane-dense), then chunk R into Rt-row blocks.
    R = pl.cdiv(F, lanes)
    R = _round_up(R, sub)
    Rt = min(R, rt_target)          # rows per block (Rt*128*4B = 1 MiB at 2048)
    R = _round_up(R, Rt)
    Fp = R * lanes
    num_chunks = R // Rt
    pad = Fp - F

    out_dtype = jnp.result_type(x.dtype, W.dtype, B.dtype)

    x2 = x.reshape(batch, F)
    w2 = W.reshape(F)
    b2 = B.reshape(F)
    if pad:
        x2 = jnp.pad(x2, ((0, 0), (0, pad)))
        w2 = jnp.pad(w2, ((0, pad),))
        b2 = jnp.pad(b2, ((0, pad),))
    x3 = x2.reshape(batch, R, lanes)
    w3 = w2.reshape(R, lanes)
    b3 = b2.reshape(R, lanes)

    itemsize = jnp.dtype(out_dtype).itemsize
    cost = pl.CostEstimate(
        flops=2 * batch * Fp,
        transcendentals=0,
        bytes_accessed=int((2 * batch + 2) * Fp * itemsize),
    )

    out3 = pl.pallas_call(
        _ew_kernel,
        out_shape=jax.ShapeDtypeStruct((batch, R, lanes), out_dtype),
        grid_spec=pltpu.PrefetchScalarGridSpec(
            num_scalar_prefetch=0,
            # F-chunks outer, batch inner: W/B block index is unchanged across
            # consecutive batch steps, so each W/B chunk is fetched only once.
            grid=(num_chunks, batch),
            in_specs=[
                pl.BlockSpec((1, Rt, lanes), lambda r, b: (b, r, 0)),   # x
                pl.BlockSpec((Rt, lanes), lambda r, b: (r, 0)),         # W
                pl.BlockSpec((Rt, lanes), lambda r, b: (r, 0)),         # B
            ],
            out_specs=pl.BlockSpec((1, Rt, lanes), lambda r, b: (b, r, 0)),
        ),
        compiler_params=pltpu.CompilerParams(
            dimension_semantics=("parallel", "parallel"),
            vmem_limit_bytes=32 * 1024 * 1024,
        ),
        cost_estimate=cost,
    )(x3, w3, b3)

    out2 = out3.reshape(batch, Fp)[:, :F]
    return out2.reshape((batch,) + feat_shape)


# ----------------------------------------------------------------------------
# Plain-JAX pieces of FourierSpectralBlock (no clean Pallas equivalent)
# TODO(synk): FFT/IFFT + fftshift, grouped 1x1 Conv3d, InstanceNorm3d, sigmoid
#             gate and GELU are left to XLA; only ElementWiseLayer is a Pallas
#             kernel.
# ----------------------------------------------------------------------------

def instance_norm(x, eps=1e-5):
    """InstanceNorm3d (affine=False): normalize per (sample, channel)."""
    mean = jnp.mean(x, axis=(2, 3, 4), keepdims=True)
    var = jnp.var(x, axis=(2, 3, 4), keepdims=True)
    return (x - mean) * jax.lax.rsqrt(var + eps)


def conv3d_1x1(x, w, b, groups=1):
    """Grouped 1x1x1 Conv3d.  x: (B, Cin, X, Y, Z); w: (Cout, Cin//groups)."""
    B_, Cin, X, Y, Z = x.shape
    Cout, cig = w.shape
    cog = Cout // groups
    xg = x.reshape(B_, groups, cig, X, Y, Z)
    wg = w.reshape(groups, cog, cig)
    y = jnp.einsum("bgixyz,goi->bgoxyz", xg, wg)
    y = y.reshape(B_, Cout, X, Y, Z)
    return y + b.reshape(1, Cout, 1, 1, 1)


def pad3d(x, target):
    """Pad or crop the spatial dims (2,3,4) of x to target=(X, Y, Z),
    matching torch.nn.functional.pad with (ceil(d/2), d-ceil(d/2)) per dim."""
    out = x
    for axis, tgt in zip((2, 3, 4), target):
        delta = tgt - out.shape[axis]
        left = math.ceil(delta / 2)
        right = delta - left
        if left < 0 or right < 0:          # crop (negative padding)
            start = -left if left < 0 else 0
            stop = out.shape[axis] + (right if right < 0 else 0)
            idx = [slice(None)] * out.ndim
            idx[axis] = slice(start, stop)
            out = out[tuple(idx)]
        pl_, pr_ = max(left, 0), max(right, 0)
        if pl_ or pr_:                      # pad (positive padding)
            pw = [(0, 0)] * out.ndim
            pw[axis] = (pl_, pr_)
            out = jnp.pad(out, pw)
    return out


def _fft_along_axis(x, axis):
    x = jnp.moveaxis(x, axis, -1)
    x = jnp.fft.fft(x, axis=-1)
    return jnp.moveaxis(x, -1, axis)


def get_fft(x):
    """torch: rfftn over ALL dims, fftshift, min-max normalize re/im, concat."""
    f = jnp.fft.rfft(x, axis=-1)
    for ax in range(x.ndim - 1):           # complex FFT over the remaining axes
        f = _fft_along_axis(f, ax)
    f = jnp.fft.fftshift(f)
    real, imag = jnp.real(f), jnp.imag(f)
    rmin, rmax = real.min(), real.max()
    imin, imax = imag.min(), imag.max()
    real = (real - rmin) / (rmax - rmin)
    imag = (imag - imin) / (imax - imin)
    return jnp.concatenate([real, imag], axis=1), (rmin, rmax), (imin, imax)


def get_filtered_inverse_fft(freq, shape):
    real_imag = pad3d(freq, (shape, shape, shape // 2 + 1))
    half = freq.shape[1] // 2
    real, imag = real_imag[:, :half], real_imag[:, half:]
    f = jax.lax.complex(real, imag)
    f = jnp.fft.ifftshift(f)
    rec = jnp.fft.irfftn(f, s=(shape, shape, shape))   # last 3 axes
    return jnp.real(rec)


def fourier_spectral_block_forward(x, params, *, in_features, out_features,
                                   img_size, cropped):
    # spatial branch: grouped 1x1 conv
    y_spatial = conv3d_1x1(x, params["spatial_w"], params["spatial_b"],
                           groups=in_features)

    # frequency branch
    y, (rmin, rmax), (imin, imax) = get_fft(x)
    y = pad3d(y, (cropped, cropped, cropped // 2 + 1))

    g = conv3d_1x1(y, params["gate_w"], params["gate_b"], groups=1)
    auto_filter = jax.nn.sigmoid(instance_norm(g))

    z = instance_norm(y)
    z = element_wise_layer(z, params["ew_W"], params["ew_B"])   # Pallas kernel
    z = conv3d_1x1(z, params["freq_w"], params["freq_b"], groups=in_features * 2)

    half = z.shape[1] // 2
    zr = (z[:, :half] * (rmax - rmin) + rmin) * auto_filter
    zi = (z[:, half:] * (imax - imin) + imin) * auto_filter
    y = jnp.concatenate([zr, zi], axis=1)

    y = get_filtered_inverse_fft(y, shape=img_size)
    y = y_spatial + y
    y = instance_norm(y)
    y = jax.nn.gelu(y, approximate=False)
    # Dropout(p=0.0) is the identity.
    return y


# ----------------------------------------------------------------------------
# Parameter init
# ----------------------------------------------------------------------------

def init_elementwise_params(key, c, n, dtype=jnp.float32):
    """ElementWiseLayer init: B = zeros, W = xavier_normal_ over (1,c,n,n,n//2+1)."""
    m = n // 2 + 1
    shape = (1, c, n, n, m)
    receptive = n * n * m
    fan_in, fan_out = c * receptive, 1 * receptive
    std = math.sqrt(2.0 / (fan_in + fan_out))
    W = (std * jax.random.normal(key, shape, jnp.float32)).astype(dtype)
    B = jnp.zeros(shape, dtype)
    return W, B


def init_block_params(key, in_features, out_features, img_size, crop_ratio=0.25):
    # NOTE: conv weights use a simple scaled-normal init (exact torch kaiming
    # parity is not required for forward semantics).
    cropped = int(img_size * crop_ratio)
    c2 = in_features * 2
    ks = jax.random.split(key, 4)
    params = {
        "spatial_w": (1.0 / math.sqrt(1.0)) *
                     jax.random.normal(ks[0], (out_features, 1), jnp.float32),
        "spatial_b": jnp.zeros((out_features,), jnp.float32),
        "gate_w": (1.0 / math.sqrt(c2)) *
                  jax.random.normal(ks[1], (out_features, c2), jnp.float32),
        "gate_b": jnp.zeros((out_features,), jnp.float32),
        "freq_w": (1.0 / math.sqrt(1.0)) *
                  jax.random.normal(ks[2], (2 * out_features, 1), jnp.float32),
        "freq_b": jnp.zeros((2 * out_features,), jnp.float32),
    }
    params["ew_W"], params["ew_B"] = init_elementwise_params(ks[3], c2, cropped)
    return params, cropped


# ----------------------------------------------------------------------------

if __name__ == "__main__":
    key = jax.random.PRNGKey(0)
    k1, k2, k3, k4 = jax.random.split(key, 4)

    # --- 1) ElementWiseLayer Pallas kernel vs. reference ---------------------
    batch, c, n = 2, 4, 16
    m = n // 2 + 1                                        # 9
    W, Bp = init_elementwise_params(k1, c, n)
    x_ew = jax.random.normal(k2, (batch, c, n, n, m), jnp.float32)
    out = jax.block_until_ready(element_wise_layer(x_ew, W, Bp))
    ref = x_ew * W + Bp
    assert out.shape == (batch, c, n, n, m)
    assert jnp.allclose(out, ref, atol=1e-6, rtol=1e-6)

    # padded path (F not a multiple of 1024)
    c2, n2 = 3, 10
    m2 = n2 // 2 + 1
    W2, B2 = init_elementwise_params(k3, c2, n2)
    x2 = jax.random.normal(k4, (batch, c2, n2, n2, m2), jnp.float32)
    out2 = jax.block_until_ready(element_wise_layer(x2, W2, B2))
    assert jnp.allclose(out2, x2 * W2 + B2, atol=1e-6, rtol=1e-6)

    # --- 2) Full FourierSpectralBlock forward (Pallas kernel embedded) -------
    in_features, out_features, img_size = 2, 4, 16
    params, cropped = init_block_params(k1, in_features, out_features, img_size)
    xb = jax.random.normal(
        k2, (batch, in_features, img_size, img_size, img_size), jnp.float32)

    fwd = jax.jit(lambda xx, pp: fourier_spectral_block_forward(
        xx, pp, in_features=in_features, out_features=out_features,
        img_size=img_size, cropped=cropped))
    yb = jax.block_until_ready(fwd(xb, params))
    assert yb.shape == (batch, out_features, img_size, img_size, img_size)
    assert bool(jnp.all(jnp.isfinite(yb)))

    print("KERNEL_OK")
</pallas_src>

<mosaic_0001>
module attributes {stable_mosaic.version = 11 : i64} {
  func.func @_ew_kernel(%arg0: i32, %arg1: i32, %arg2: memref<1x72x128xf32, #tpu.memory_space<vmem>>, %arg3: memref<72x128xf32, #tpu.memory_space<vmem>>, %arg4: memref<72x128xf32, #tpu.memory_space<vmem>>, %arg5: memref<1x72x128xf32, #tpu.memory_space<vmem>>) attributes {dimension_semantics = [#tpu.dimension_semantics<parallel>, #tpu.dimension_semantics<parallel>], iteration_bounds = array<i64: 1, 2>, scalar_prefetch = 0 : i64, scratch_operands = 0 : i64, tpu.core_type = #tpu.core_type<tc>, window_params = [{transform_indices = @transform_0, window_bounds = array<i64: 1, 72, 128>}, {transform_indices = @transform_1, window_bounds = array<i64: 72, 128>}, {transform_indices = @transform_2, window_bounds = array<i64: 72, 128>}, {transform_indices = @transform_3, window_bounds = array<i64: 1, 72, 128>}]} {
    %c0 = arith.constant 0 : index
    %c0_0 = arith.constant 0 : index
    %c0_1 = arith.constant 0 : index
    %0 = vector.load %arg2[%c0, %c0_0, %c0_1] : memref<1x72x128xf32, #tpu.memory_space<vmem>>, vector<1x72x128xf32>
    %1 = vector.shape_cast %0 : vector<1x72x128xf32> to vector<72x128xf32>
    %c0_2 = arith.constant 0 : index
    %c0_3 = arith.constant 0 : index
    %2 = vector.load %arg3[%c0_2, %c0_3] : memref<72x128xf32, #tpu.memory_space<vmem>>, vector<72x128xf32>
    %3 = arith.mulf %1, %2 : vector<72x128xf32>
    %c0_4 = arith.constant 0 : index
    %c0_5 = arith.constant 0 : index
    %4 = vector.load %arg4[%c0_4, %c0_5] : memref<72x128xf32, #tpu.memory_space<vmem>>, vector<72x128xf32>
    %5 = arith.addf %3, %4 : vector<72x128xf32>
    %c0_6 = arith.constant 0 : index
    %c0_7 = arith.constant 0 : index
    %c0_8 = arith.constant 0 : index
    %6 = vector.load %arg5[%c0_6, %c0_7, %c0_8] : memref<1x72x128xf32, #tpu.memory_space<vmem>>, vector<1x72x128xf32>
    %7 = vector.shape_cast %6 : vector<1x72x128xf32> to vector<72x128xf32>
    %8 = vector.shape_cast %5 : vector<72x128xf32> to vector<1x72x128xf32>
    tpu.vector_store %arg5[%c0_6, %c0_7, %c0_8], %8 {strides = array<i32>} : memref<1x72x128xf32, #tpu.memory_space<vmem>>, vector<1x72x128xf32>,
    return
  }
  func.func @transform_0(%arg0: i32, %arg1: i32) -> (i32, i32, i32) {
    %c0_i32 = arith.constant 0 : i32
    %c0_i32_0 = arith.constant 0 : i32
    return %arg1, %arg0, %c0_i32 : i32, i32, i32
  }
  func.func @transform_1(%arg0: i32, %arg1: i32) -> (i32, i32) {
    %c0_i32 = arith.constant 0 : i32
    %c0_i32_0 = arith.constant 0 : i32
    return %arg0, %c0_i32 : i32, i32
  }
  func.func @transform_2(%arg0: i32, %arg1: i32) -> (i32, i32) {
    %c0_i32 = arith.constant 0 : i32
    %c0_i32_0 = arith.constant 0 : i32
    return %arg0, %c0_i32 : i32, i32
  }
  func.func @transform_3(%arg0: i32, %arg1: i32) -> (i32, i32, i32) {
    %c0_i32 = arith.constant 0 : i32
    %c0_i32_0 = arith.constant 0 : i32
    return %arg1, %arg0, %c0_i32 : i32, i32, i32
  }
}

</mosaic_0001>

<llo_original>
// kernel: tpu_custom_call.1
$region0: #{tpu_custom_call.1}
  #allocation0 [shape = 'u32[]', space=smem, size = 0x4, offset = 0x4, fixed_abs, tag = 'smem constant byte address 0x4 - core index']
  #allocation1 [shape = 'u32[144,128]{1,0:T(1,128)}', space=vmem, size = 0x12000, scoped, tag = 'internal scratch']
  %s0 = inlined_call_operand.hbm [shape: f32[2,72,128], index: 0, kind: input, shape index: {}]
  %s1 = inlined_call_operand.hbm [shape: f32[72,128], index: 1, kind: input, shape index: {}]
  %s2 = inlined_call_operand.hbm [shape: f32[72,128], index: 2, kind: input, shape index: {}]
  %s3 = inlined_call_operand.hbm [shape: f32[2,72,128], index: 3, kind: output, shape index: {}]
  %s4 = sld [smem:[#allocation0]]
  $region57: #{tpu_custom_call.1} parent=0
    _
  %s6 = ssub.s32 1, %s4
  %s7 = scalar_select 0, %s6, %s4
  $region1: #{tpu_custom_call.1} parent=0
    #allocation2 [shape = 'u8[73728]{0}', space=vmem, size = 0x12000, scoped, tag = 'input window, operand 0']
    #allocation3 [shape = 's32[2]{0}', space=sflag, size = 0x8, scoped, tag = 'scoped memory for tpu_custom_call.1']
    #allocation4 [shape = 's32[2]{0}', space=sflag, size = 0x8, scoped, tag = 'scoped memory for tpu_custom_call.1']
    #allocation5 [shape = 'u8[36864]{0}', space=vmem, size = 0x9000, scoped, tag = 'input window, operand 1, single buffered']
    #allocation6 [shape = 's32[1]{0}', space=sflag, size = 0x4, scoped, tag = 'scoped memory for tpu_custom_call.1']
    #allocation7 [shape = 'u8[36864]{0}', space=vmem, size = 0x9000, scoped, tag = 'input window, operand 2, single buffered']
    #allocation8 [shape = 'u8[73728]{0}', space=vmem, size = 0x12000, scoped, tag = 'output window, operand 0']
    %8 = vsyncpa [#allocation3], 0
    %s9 = scalar_lea.sflag [#allocation3], 1
    %10 = vsyncpa %s9, 0
    %11 = vsyncpa [#allocation6], 0
    %12 = vsyncpa [#allocation4], 0
    %s13 = scalar_lea.sflag [#allocation4], 1
    %14 = vsyncpa %s13, 0
    loop: start=0, step=1, limit=4
    $region2: #{tpu_custom_call.1} parent=1 // loop_pre_header
      _
    $region3: #{tpu_custom_call.1} parent=1 // loop_header
      %s16 = sphi 0, %s20
      %p17 = scmp.ge.s32.totalorder %s16, 4
      %s23 = sphi 0, %s35
      %s24 = sphi 0, %s31
      %s25 = sphi 0, %s23
      %s26 = sphi 0, %s24
      %s27 = sphi 0, %s25
      %s28 = sphi 0, %s26
      %s40 = sphi 0, %s42
      %s43 = sphi 0, %s40
      %s44 = sphi 0, %s43
      %s60 = sphi 0, %s44
      %s66 = sphi 0, %s68
      %s69 = sphi 0, %s66
      %s70 = sphi 0, %s69
      %s86 = sphi 0, %s70
      %s92 = sphi 0, %s94
      %s95 = sphi 0, %s92
      %s96 = sphi 0, %s95
      %s112 = sphi 0, %s96
      %s120 = sphi 0, %s122
      %s123 = sphi 0, %s120
      %s124 = sphi 0, %s123
      %s140 = sphi 0, %s124
    $region4: #{tpu_custom_call.1} parent=1 // loop_header_branch
      %19 = sbr.rel (%p17) target = $region8
    $region5: #{tpu_custom_call.1} parent=1 // loop_body
      %s21 = ssub.s32 %s16, 1
      %s22 = ssub.s32 %s16, 2
      %s29 = sadd.s32 1, %s24
      %p30 = scmp.ge.s32.totalorder %s29, 2
      %s31 = scalar_select %p30, 0, %s29
      %s32 = sadd.s32 1, %s23
      %s33 = scalar_select %p30, %s32, %s23
      %p34 = scmp.ge.s32.totalorder %s33, 1
      %s35 = scalar_select %p34, 0, %s33
      %s36 = ssub.s32 %s24, %s31
      %s37 = ssub.s32 %s23, %s35
      %s38 = sor.u32 %s36, %s37
      %p39 = scmp.eq.s32.totalorder %s38, 0
      %s41 = sadd.s32 %s40, 1
      %s42 = scalar_select %p39, %s40, %s41
      %p45 = pneg %p39
      %p46 = scmp.eq.s32.totalorder %s16, 1
      %p47 = por %p45, %p46
      %p48 = scmp.ne.s32.totalorder %s40, %s43
      %p49 = scmp.eq.s32.totalorder %s16, 0
      %p50 = por %p48, %p49
      %p51 = scmp.ne.s32.totalorder %s40, %s43
      %p52 = scmp.eq.s32.totalorder %s21, 1
      %p53 = por %p51, %p52
      %p54 = scmp.ne.s32.totalorder %s43, %s44
      %p55 = scmp.eq.s32.totalorder %s21, 0
      %p56 = por %p54, %p55
      %p57 = scmp.ne.s32.totalorder %s43, %s44
      %p58 = scmp.eq.s32.totalorder %s22, 1
      %p59 = por %p57, %p58
      %p61 = scmp.ne.s32.totalorder %s44, %s60
      %p62 = scmp.eq.s32.totalorder %s22, 0
      %p63 = por %p61, %p62
      %s64 = ssub.s32 %s23, %s35
      %p65 = scmp.eq.s32.totalorder %s64, 0
      %s67 = sadd.s32 %s66, 1
      %s68 = scalar_select %p65, %s66, %s67
      %p71 = pneg %p65
      %p72 = scmp.eq.s32.totalorder %s16, 1
      %p73 = por %p71, %p72
      %p74 = scmp.ne.s32.totalorder %s66, %s69
      %p75 = scmp.eq.s32.totalorder %s16, 0
      %p76 = por %p74, %p75
      %p77 = scmp.ne.s32.totalorder %s66, %s69
      %p78 = scmp.eq.s32.totalorder %s21, 1
      %p79 = por %p77, %p78
      %p80 = scmp.ne.s32.totalorder %s69, %s70
      %p81 = scmp.eq.s32.totalorder %s21, 0
      %p82 = por %p80, %p81
      %p83 = scmp.ne.s32.totalorder %s69, %s70
      %p84 = scmp.eq.s32.totalorder %s22, 1
      %p85 = por %p83, %p84
      %p87 = scmp.ne.s32.totalorder %s70, %s86
      %p88 = scmp.eq.s32.totalorder %s22, 0
      %p89 = por %p87, %p88
      %s90 = ssub.s32 %s23, %s35
      %p91 = scmp.eq.s32.totalorder %s90, 0
      %s93 = sadd.s32 %s92, 1
      %s94 = scalar_select %p91, %s92, %s93
      %p97 = pneg %p91
      %p98 = scmp.eq.s32.totalorder %s16, 1
      %p99 = por %p97, %p98
      %p100 = scmp.ne.s32.totalorder %s92, %s95
      %p101 = scmp.eq.s32.totalorder %s16, 0
      %p102 = por %p100, %p101
      %p103 = scmp.ne.s32.totalorder %s92, %s95
      %p104 = scmp.eq.s32.totalorder %s21, 1
      %p105 = por %p103, %p104
      %p106 = scmp.ne.s32.totalorder %s95, %s96
      %p107 = scmp.eq.s32.totalorder %s21, 0
      %p108 = por %p106, %p107
      %p109 = scmp.ne.s32.totalorder %s95, %s96
      %p110 = scmp.eq.s32.totalorder %s22, 1
      %p111 = por %p109, %p110
      %p113 = scmp.ne.s32.totalorder %s96, %s112
      %p114 = scmp.eq.s32.totalorder %s22, 0
      %p115 = por %p113, %p114
      %s116 = ssub.s32 %s24, %s31
      %s117 = ssub.s32 %s23, %s35
      %s118 = sor.u32 %s116, %s117
      %p119 = scmp.eq.s32.totalorder %s118, 0
      %s121 = sadd.s32 %s120, 1
      %s122 = scalar_select %p119, %s120, %s121
      %p125 = pneg %p119
      %p126 = scmp.eq.s32.totalorder %s16, 1
      %p127 = por %p125, %p126
      %p128 = scmp.ne.s32.totalorder %s120, %s123
      %p129 = scmp.eq.s32.totalorder %s16, 0
      %p130 = por %p128, %p129
      %p131 = scmp.ne.s32.totalorder %s120, %s123
      %p132 = scmp.eq.s32.totalorder %s21, 1
      %p133 = por %p131, %p132
      %p134 = scmp.ne.s32.totalorder %s123, %s124
      %p135 = scmp.eq.s32.totalorder %s21, 0
      %p136 = por %p134, %p135
      %p137 = scmp.ne.s32.totalorder %s123, %s124
      %p138 = scmp.eq.s32.totalorder %s22, 1
      %p139 = por %p137, %p138
      %p141 = scmp.ne.s32.totalorder %s124, %s140
      %p142 = scmp.eq.s32.totalorder %s22, 0
      %p143 = por %p141, %p142
      %p144 = scmp.le.s32.totalorder 1, %s16
      %p145 = scmp.lt.s32.totalorder %s16, 3
      %p146 = pnand %p144, %p145
      %p147 = pneg %p146
      // Predicated region
      $region9: #{tpu_custom_call.1} parent=5 // pred_check
        _
      $region10: #{tpu_custom_call.1} parent=5 // pred_check_branch
        %149 = sbr.rel (%p146) target = $region12
      $region11: #{tpu_custom_call.1} parent=5 // pred_region
        %s150 = ssub.s32 %s16, 1
        // Predicated region
        $region13: #{tpu_custom_call.1} parent=11 // pred_check
          %p151 = pneg %p82
        $region14: #{tpu_custom_call.1} parent=11 // pred_check_branch
          %153 = sbr.rel (%p151) target = $region16
        $region15: #{tpu_custom_call.1} parent=11 // pred_region
          %s154 = smul.u32 9, %s25
          %s156 = ssub.s32 1152, 1152
          %157 = vsyncadd [#allocation6], %s156
          %s158 = smul.addr %s154, 128
          %s159 = scalar_lea.hbm %s1, %s158
          %s160 = sshll.u32 [#allocation5], 4
          %s161 = int_to_ptr.vmem [resolvable:$true] %s160
          %166 = dma.hbm_to_vmem [thread:$0]  %s159, 1152, %s161, [#allocation6], 128, 128, 8
        $region16: #{tpu_custom_call.1} parent=11 // pred_fallthru
          _
        // Predicated region
        $region17: #{tpu_custom_call.1} parent=11 // pred_check
          %p167 = pneg %p108
        $region18: #{tpu_custom_call.1} parent=11 // pred_check_branch
          %169 = sbr.rel (%p167) target = $region20
        $region19: #{tpu_custom_call.1} parent=11 // pred_region
          %s170 = smul.u32 9, %s25
          %s172 = ssub.s32 1152, 1152
          %173 = vsyncadd [#allocation6], %s172
          %s174 = smul.addr %s170, 128
          %s175 = scalar_lea.hbm %s2, %s174
          %s176 = sshll.u32 [#allocation7], 4
          %s177 = int_to_ptr.vmem [resolvable:$true] %s176
          %182 = dma.hbm_to_vmem [thread:$0]  %s175, 1152, %s177, [#allocation6], 128, 128, 8
        $region20: #{tpu_custom_call.1} parent=11 // pred_fallthru
          _
      $region12: #{tpu_custom_call.1} parent=5 // pred_fallthru
        _
      %p183 = scmp.lt.s32.totalorder %s16, 2
      // Predicated region
      $region21: #{tpu_custom_call.1} parent=5 // pred_check
        %p184 = pneg %p183
      $region22: #{tpu_custom_call.1} parent=5 // pred_check_branch
        %186 = sbr.rel (%p184) target = $region24
      $region23: #{tpu_custom_call.1} parent=5 // pred_region
        // Predicated region
        $region25: #{tpu_custom_call.1} parent=23 // pred_check
          %p187 = pneg %p50
        $region26: #{tpu_custom_call.1} parent=23 // pred_check_branch
          %189 = sbr.rel (%p187) target = $region28
        $region27: #{tpu_custom_call.1} parent=23 // pred_region
          %s190 = sand.u32 %s40, 1
          %s191 = scalar_lea.sflag [#allocation3], %s190
          %s192 = sand.u32 %s40, 1
          %s193 = smul.addr %s192, 72
          %s194 = scalar_lea.vmem [#allocation2], %s193
          %s195 = smul.u32 9, %s23
          %s197 = ssub.s32 1152, 1152
          %198 = vsyncadd %s191, %s197
          %s199 = smul.addr %s24, 9
          %s200 = sadd.s32 %s195, %s199
          %s201 = smul.addr %s200, 128
          %s202 = scalar_lea.hbm %s0, %s201
          %s203 = sshll.u32 %s194, 4
          %s204 = int_to_ptr.vmem [resolvable:$true] %s203
          %209 = dma.hbm_to_vmem [thread:$0]  %s202, 1152, %s204, %s191, 128, 128, 8
        $region28: #{tpu_custom_call.1} parent=23 // pred_fallthru
          _
      $region24: #{tpu_custom_call.1} parent=5 // pred_fallthru
        _
      %p210 = scmp.le.s32.totalorder 1, %s16
      %p211 = scmp.lt.s32.totalorder %s16, 3
      %p212 = pnand %p210, %p211
      %p213 = pneg %p212
      // Predicated region
      $region29: #{tpu_custom_call.1} parent=5 // pred_check
        _
      $region30: #{tpu_custom_call.1} parent=5 // pred_check_branch
        %215 = sbr.rel (%p212) target = $region32
      $region31: #{tpu_custom_call.1} parent=5 // pred_region
        %s216 = ssub.s32 %s16, 1
        %s217 = sand.u32 %s43, 1
        %s218 = scalar_lea.sflag [#allocation3], %s217
        %s219 = sand.u32 %s43, 1
        %s220 = smul.addr %s219, 72
        %s221 = scalar_lea.vmem [#allocation2], %s220
        // Predicated region
        $region33: #{tpu_custom_call.1} parent=31 // pred_check
          %p222 = pneg %p56
        $region34: #{tpu_custom_call.1} parent=31 // pred_check_branch
          %224 = sbr.rel (%p222) target = $region36
        $region35: #{tpu_custom_call.1} parent=31 // pred_region
          %225 = dma.done %s218, 1152
        $region36: #{tpu_custom_call.1} parent=31 // pred_fallthru
          _
        // Predicated region
        $region37: #{tpu_custom_call.1} parent=31 // pred_check
          %p226 = pneg %p82
        $region38: #{tpu_custom_call.1} parent=31 // pred_check_branch
          %228 = sbr.rel (%p226) target = $region40
        $region39: #{tpu_custom_call.1} parent=31 // pred_region
          %229 = dma.done [#allocation6], 1152
        $region40: #{tpu_custom_call.1} parent=31 // pred_fallthru
          _
        // Predicated region
        $region41: #{tpu_custom_call.1} parent=31 // pred_check
          %p230 = pneg %p108
        $region42: #{tpu_custom_call.1} parent=31 // pred_check_branch
          %232 = sbr.rel (%p230) target = $region44
        $region43: #{tpu_custom_call.1} parent=31 // pred_region
          %233 = dma.done [#allocation6], 1152
        $region44: #{tpu_custom_call.1} parent=31 // pred_fallthru
          _
        %s234 = sand.u32 %s43, 1
        %s235 = scalar_lea.sflag [#allocation3], %s234
        %s236 = sand.u32 %s43, 1
        %s237 = smul.addr %s236, 72
        %s238 = scalar_lea.vmem [#allocation2], %s237
        %p239 = pneg %p56
        %p240 = pneg %p53
        %p241 = pneg %p82
        %p242 = pneg %p79
        %p243 = pneg %p108
        %p244 = pneg %p105
        %p245 = pneg %p136
        %p246 = pneg %p133
        %s247 = sand.u32 %s123, 1
        %s248 = scalar_lea.sflag [#allocation4], %s247
        %s249 = sand.u32 %s123, 1
        %s250 = smul.addr %s249, 72
        %s251 = scalar_lea.vmem [#allocation8], %s250
        %s252 = smul.u32 9, %s25
        %s253 = smul.u32 9, %s25
        %s254 = smul.u32 9, %s25
        %s255 = smul.u32 9, %s25
        %v256 = vld [vmem:[%s221] sm:$0xff]
        %v257 = vld [vmem:[%s221 + $0x8] sm:$0xff]
        %v258 = vld [vmem:[%s221 + $0x10] sm:$0xff]
        %v259 = vld [vmem:[%s221 + $0x18] sm:$0xff]
        %v260 = vld [vmem:[%s221 + $0x20] sm:$0xff]
        %v261 = vld [vmem:[%s221 + $0x28] sm:$0xff]
        %v262 = vld [vmem:[%s221 + $0x30] sm:$0xff]
        %v263 = vld [vmem:[%s221 + $0x38] sm:$0xff]
        %v264 = vld [vmem:[%s221 + $0x40] sm:$0xff]
        %v265 = vld [vmem:[#allocation5] sm:$0xff]
        %v266 = vld [vmem:[#allocation5 + $0x8] sm:$0xff]
        %v267 = vld [vmem:[#allocation5 + $0x10] sm:$0xff]
        %v268 = vld [vmem:[#allocation5 + $0x18] sm:$0xff]
        %v269 = vld [vmem:[#allocation5 + $0x20] sm:$0xff]
        %v270 = vld [vmem:[#allocation5 + $0x28] sm:$0xff]
        %v271 = vld [vmem:[#allocation5 + $0x30] sm:$0xff]
        %v272 = vld [vmem:[#allocation5 + $0x38] sm:$0xff]
        %v273 = vld [vmem:[#allocation5 + $0x40] sm:$0xff]
        %v274 = vmul.f32 %v256, %v265
        %v275 = vmul.f32 %v257, %v266
        %v276 = vmul.f32 %v258, %v267
        %v277 = vmul.f32 %v259, %v268
        %v278 = vmul.f32 %v260, %v269
        %v279 = vmul.f32 %v261, %v270
        %v280 = vmul.f32 %v262, %v271
        %v281 = vmul.f32 %v263, %v272
        %v282 = vmul.f32 %v264, %v273
        %v283 = vld [vmem:[#allocation7] sm:$0xff]
        %v284 = vld [vmem:[#allocation7 + $0x8] sm:$0xff]
        %v285 = vld [vmem:[#allocation7 + $0x10] sm:$0xff]
        %v286 = vld [vmem:[#allocation7 + $0x18] sm:$0xff]
        %v287 = vld [vmem:[#allocation7 + $0x20] sm:$0xff]
        %v288 = vld [vmem:[#allocation7 + $0x28] sm:$0xff]
        %v289 = vld [vmem:[#allocation7 + $0x30] sm:$0xff]
        %v290 = vld [vmem:[#allocation7 + $0x38] sm:$0xff]
        %v291 = vld [vmem:[#allocation7 + $0x40] sm:$0xff]
        %v292 = vadd.f32 %v274, %v283
        %v293 = vadd.f32 %v275, %v284
        %v294 = vadd.f32 %v276, %v285
        %v295 = vadd.f32 %v277, %v286
        %v296 = vadd.f32 %v278, %v287
        %v297 = vadd.f32 %v279, %v288
        %v298 = vadd.f32 %v280, %v289
        %v299 = vadd.f32 %v281, %v290
        %v300 = vadd.f32 %v282, %v291
        %301 = vst [vmem:[%s251] sm:$0xff] %v292
        %302 = vst [vmem:[%s251 + $0x8] sm:$0xff] %v293
        %303 = vst [vmem:[%s251 + $0x10] sm:$0xff] %v294
        %304 = vst [vmem:[%s251 + $0x18] sm:$0xff] %v295
        %305 = vst [vmem:[%s251 + $0x20] sm:$0xff] %v296
        %306 = vst [vmem:[%s251 + $0x28] sm:$0xff] %v297
        %307 = vst [vmem:[%s251 + $0x30] sm:$0xff] %v298
        %308 = vst [vmem:[%s251 + $0x38] sm:$0xff] %v299
        %309 = vst [vmem:[%s251 + $0x40] sm:$0xff] %v300
        %s310 = sand.u32 %s123, 1
        %s311 = scalar_lea.sflag [#allocation4], %s310
        %s312 = sand.u32 %s123, 1
        %s313 = smul.addr %s312, 72
        %s314 = scalar_lea.vmem [#allocation8], %s313
        // Predicated region
        $region45: #{tpu_custom_call.1} parent=31 // pred_check
          %p315 = pneg %p133
        $region46: #{tpu_custom_call.1} parent=31 // pred_check_branch
          %317 = sbr.rel (%p315) target = $region48
        $region47: #{tpu_custom_call.1} parent=31 // pred_region
          %s318 = smul.u32 9, %s25
          %s320 = ssub.s32 1152, 1152
          %321 = vsyncadd %s311, %s320
          %s322 = smul.addr %s26, 9
          %s323 = sadd.s32 %s318, %s322
          %s324 = smul.addr %s323, 128
          %s325 = scalar_lea.hbm %s3, %s324
          %s326 = sshll.u32 %s314, 4
          %s327 = int_to_ptr.vmem [resolvable:$true] %s326
          %332 = dma.vmem_to_hbm [thread:$0]  %s327, 1152, %s325, %s311, 128, 128, 8
        $region48: #{tpu_custom_call.1} parent=31 // pred_fallthru
          _
      $region32: #{tpu_custom_call.1} parent=5 // pred_fallthru
        _
      %p333 = scmp.le.s32.totalorder 2, %s16
      // Predicated region
      $region49: #{tpu_custom_call.1} parent=5 // pred_check
        %p334 = pneg %p333
      $region50: #{tpu_custom_call.1} parent=5 // pred_check_branch
        %336 = sbr.rel (%p334) target = $region52
      $region51: #{tpu_custom_call.1} parent=5 // pred_region
        %s337 = ssub.s32 %s16, 2
        // Predicated region
        $region53: #{tpu_custom_call.1} parent=51 // pred_check
          %p338 = pneg %p139
        $region54: #{tpu_custom_call.1} parent=51 // pred_check_branch
          %340 = sbr.rel (%p338) target = $region56
        $region55: #{tpu_custom_call.1} parent=51 // pred_region
          %s341 = sand.u32 %s124, 1
          %s342 = scalar_lea.sflag [#allocation4], %s341
          %s343 = sand.u32 %s124, 1
          %s344 = smul.addr %s343, 72
          %s345 = scalar_lea.vmem [#allocation8], %s344
          %346 = dma.done %s342, 1152
        $region56: #{tpu_custom_call.1} parent=51 // pred_fallthru
          _
      $region52: #{tpu_custom_call.1} parent=5 // pred_fallthru
        _
    $region6: #{tpu_custom_call.1} parent=1 // loop_footer
      %s20 = sadd.s32 1, %s16
    $region7: #{tpu_custom_call.1} parent=1 // loop_footer_branch
      %15 = sbr.rel target = $region3
    $region8: #{tpu_custom_call.1} parent=1 // loop_exit
      _
    %347 = vsyncpa [#allocation3], 1
    %s348 = scalar_lea.sflag [#allocation3], 1
    %349 = vsyncpa %s348, 1
    %350 = vsyncpa [#allocation6], 1
    %351 = vsyncpa [#allocation4], 1
    %s352 = scalar_lea.sflag [#allocation4], 1
    %353 = vsyncpa %s352, 1

</llo_original>
